<compile_context>
chip_gen: v7x
topology: tpu7x:2x2x1
jax: 0.10.0
libtpu: 0.0.40
codegen_flags: <defaults>
</compile_context>

<pallas_src>
import math
import functools

import jax
import jax.numpy as jnp
from jax.experimental import pallas as pl
from jax.experimental.pallas import tpu as pltpu


def _build_pe(d_model: int, max_len: int) -> jnp.ndarray:
    """Sinusoidal positional-encoding buffer [max_len, 1, d_model] (matches torch init)."""
    position = jnp.arange(max_len, dtype=jnp.float32)[:, None]
    div_term = jnp.exp(
        jnp.arange(0, d_model, 2, dtype=jnp.float32) * (-math.log(10000.0) / d_model)
    )
    pe = jnp.zeros((max_len, 1, d_model), dtype=jnp.float32)
    pe = pe.at[:, 0, 0::2].set(jnp.sin(position * div_term))
    pe = pe.at[:, 0, 1::2].set(jnp.cos(position * div_term))
    return pe


def _vmem_budgets():
    """(per-step tile byte budget, scoped VMEM limit) — generation aware."""
    tile_budget, vmem_limit = 4 << 20, 32 << 20   # safe everywhere, incl. v7x (64 MiB VMEM)
    try:
        cap = int(pltpu.get_tpu_info().vmem_capacity_bytes)
        if cap >= (100 << 20):                    # v5e / v6e: 128 MiB VMEM -> larger tiles
            tile_budget, vmem_limit = 8 << 20, 64 << 20
    except Exception:
        pass                                      # no TPU visible (e.g. interpret) -> conservative
    return tile_budget, vmem_limit


def _choose_seq_tile(S: int, row_bytes: int, tile_budget_bytes: int,
                     max_tile_rows: int = 2048) -> int:
    """Multiple-of-8 sequence tile under the VMEM budget, preferring an even step count."""
    if S <= 8:
        return S
    ts_cap = max(8, min(max_tile_rows,
                        (tile_budget_bytes // max(row_bytes, 1)) // 8 * 8))
    steps = max(2, -(-S // ts_cap))     # >= 2 steps so the "parallel" axis shards across TCs
    if steps % 2:
        steps += 1                      # even step count: balanced across v7x's 2 TensorCores
    ts = -(-S // steps)
    ts = min(ts_cap, max(8, ((ts + 7) // 8) * 8))
    return ts


# --- stateless dropout PRNG (murmur3-style finalizer) ------------------------
_MIX1 = 0x9E3779B9
_MIX2 = 0x85EBCA6B
_MIX3 = 0xC2B2AE35


def _uniform_from_index(idx_i32, seed_u32):
    """[0,1) uniform from a global element index; pure VPU int ops (no TPU PRNG state)."""
    h = idx_i32.astype(jnp.uint32) * jnp.uint32(_MIX1) + seed_u32
    h = h ^ (h >> 16)
    h = h * jnp.uint32(_MIX2)
    h = h ^ (h >> 13)
    h = h * jnp.uint32(_MIX3)
    h = h ^ (h >> 16)
    return h.astype(jnp.float32) * jnp.float32(2.0 ** -32)


# --- kernels ------------------------------------------------------------------
def _pe_add_kernel(x_ref, pe_ref, o_ref, *, batch: int, dp: int):
    # x_ref/o_ref: (ts, B*Dp); pe_ref: (ts, Dp).  Per-batch lane-aligned slices
    # avoid materializing a (ts, B*Dp) replicated pe buffer.
    pe = pe_ref[...].astype(jnp.float32)
    for b in range(batch):
        sl = slice(b * dp, (b + 1) * dp)
        o_ref[:, sl] = (x_ref[:, sl].astype(jnp.float32) + pe).astype(o_ref.dtype)


def _pe_add_dropout_kernel(seed_ref, x_ref, pe_ref, o_ref, *,
                           batch: int, dp: int, p: float, seq_tile: int):
    pe = pe_ref[...].astype(jnp.float32)
    seed_u = seed_ref[0].astype(jnp.uint32)
    keep_scale = jnp.float32(1.0 / (1.0 - p))
    thresh = jnp.float32(p)
    # Global element indices -> mask is identical for any tiling / grid order.
    row0 = pl.program_id(0) * seq_tile
    rows = row0 + jax.lax.broadcasted_iota(jnp.int32, (seq_tile, dp), 0)
    cols = jax.lax.broadcasted_iota(jnp.int32, (seq_tile, dp), 1)
    row_stride = batch * dp
    for b in range(batch):
        sl = slice(b * dp, (b + 1) * dp)
        v = x_ref[:, sl].astype(jnp.float32) + pe
        idx = rows * row_stride + (cols + b * dp)
        u = _uniform_from_index(idx, seed_u)
        # Inverted dropout: keep-mask folded with the 1/(1-p) scale (single multiply).
        v = v * jnp.where(u >= thresh, keep_scale, jnp.float32(0.0))
        o_ref[:, sl] = v.astype(o_ref.dtype)


# --- wrapper ------------------------------------------------------------------
def positional_encoding_forward(
    x: jnp.ndarray,
    pe: jnp.ndarray,
    *,
    p: float = 0.1,
    training: bool = False,
    seed: int = 0,
    seq_tile: int | None = None,
) -> jnp.ndarray:
    """x: [S, B, D]; pe: [max_len, 1, D]. Returns dropout(x + pe[:S])."""
    S, B, D = x.shape
    if S > pe.shape[0]:
        raise ValueError(f"seq_len {S} exceeds positional-encoding max_len {pe.shape[0]}")
    out_dtype = jnp.promote_types(x.dtype, pe.dtype)    # torch promotion: bf16 x + f32 pe -> f32
    dropout_on = bool(training) and float(p) > 0.0
    if bool(training) and float(p) >= 1.0:
        return jnp.zeros((S, B, D), out_dtype)

    # Lane-dense layout: pad the model dim to a multiple of 128 if needed so every
    # per-batch slice and every output store is unmasked and lane-aligned.
    Dp = D if D % 128 == 0 else (-(-D // 128) * 128)
    pe_slice = pe[:S, 0, :]
    if Dp != D:
        x = jnp.pad(x, ((0, 0), (0, 0), (0, Dp - D)))
        pe_slice = jnp.pad(pe_slice, ((0, 0), (0, Dp - D)))

    # Stream pe in x's narrow dtype when it is a non-trivial share of HBM traffic
    # (small batch, sub-f32 x); the add itself is still done in f32 in-kernel.
    if B <= 8 and jnp.dtype(x.dtype).itemsize < 4:
        pe_slice = pe_slice.astype(x.dtype)

    x_flat = x.reshape(S, B * Dp)                       # contiguous, lane-dense minor dim

    tile_budget, vmem_limit = _vmem_budgets()
    row_bytes = (B * Dp) * (jnp.dtype(x.dtype).itemsize + jnp.dtype(out_dtype).itemsize) \
        + Dp * jnp.dtype(pe_slice.dtype).itemsize
    ts = _choose_seq_tile(S, row_bytes, tile_budget) if seq_tile is None else int(seq_tile)
    assert ts == S or ts % 8 == 0, "sequence tile must be a multiple of 8 (or == seq_len)"
    num_steps = -(-S // ts)                             # cdiv: partial last tile is handled

    compiler_params = pltpu.CompilerParams(
        dimension_semantics=("parallel",), vmem_limit_bytes=vmem_limit)
    out_shape = jax.ShapeDtypeStruct((S, B * Dp), out_dtype)

    if dropout_on:
        # TODO(synk): dropout mask uses a stateless hash PRNG; it cannot match
        # torch's RNG stream bit-for-bit (semantics-equivalent inverted dropout).
        kernel = functools.partial(_pe_add_dropout_kernel, batch=B, dp=Dp,
                                   p=float(p), seq_tile=ts)
        grid_spec = pltpu.PrefetchScalarGridSpec(
            num_scalar_prefetch=1,
            grid=(num_steps,),
            in_specs=[pl.BlockSpec((ts, B * Dp), lambda i, seed_ref: (i, 0)),
                      pl.BlockSpec((ts, Dp), lambda i, seed_ref: (i, 0))],
            out_specs=pl.BlockSpec((ts, B * Dp), lambda i, seed_ref: (i, 0)),
        )
        seed_arr = jnp.asarray([seed], dtype=jnp.int32)
        out_flat = pl.pallas_call(
            kernel, out_shape=out_shape, grid_spec=grid_spec,
            compiler_params=compiler_params,
        )(seed_arr, x_flat, pe_slice)
    else:
        # Inference path: no scalar-prefetch operand at all.
        kernel = functools.partial(_pe_add_kernel, batch=B, dp=Dp)
        out_flat = pl.pallas_call(
            kernel,
            out_shape=out_shape,
            grid=(num_steps,),
            in_specs=[pl.BlockSpec((ts, B * Dp), lambda i: (i, 0)),
                      pl.BlockSpec((ts, Dp), lambda i: (i, 0))],
            out_specs=pl.BlockSpec((ts, B * Dp), lambda i: (i, 0)),
            compiler_params=compiler_params,
        )(x_flat, pe_slice)

    out = out_flat.reshape(S, B, Dp)
    return out[:, :, :D] if Dp != D else out


if __name__ == "__main__":
    d_model, max_len, seq_len, batch = 32, 64, 8, 2

    key = jax.random.PRNGKey(0)
    x = jax.random.normal(key, (seq_len, batch, d_model), dtype=jnp.float32)
    pe = _build_pe(d_model, max_len)

    # Eval-mode forward (dropout = identity), matching module.eval() semantics.
    out = jax.block_until_ready(positional_encoding_forward(x, pe, p=0.1, training=False))
    ref = x + pe[:seq_len]                              # pe[:S] broadcasts over batch
    assert out.shape == (seq_len, batch, d_model)
    assert jnp.allclose(out, ref, atol=1e-6), "eval-mode mismatch vs reference"

    # Training-mode dropout path (stateless hash PRNG).
    p = 0.1
    out_tr = jax.block_until_ready(
        positional_encoding_forward(x, pe, p=p, training=True, seed=123))
    assert out_tr.shape == (seq_len, batch, d_model)
    assert bool(jnp.all(jnp.isfinite(out_tr)))
    # Every element is either dropped (0) or kept and scaled by 1/(1-p).
    kept = jnp.isclose(out_tr, ref / (1.0 - p), atol=1e-5)
    dropped = jnp.isclose(out_tr, 0.0, atol=1e-6)
    assert bool(jnp.all(kept | dropped)), "dropout output not in {0, ref/(1-p)}"

    print("KERNEL_OK")
</pallas_src>

<mosaic_0001>
module attributes {stable_mosaic.version = 11 : i64} {
  func.func @_pe_add_kernel(%arg0: i32, %arg1: memref<8x256xf32, #tpu.memory_space<vmem>>, %arg2: memref<8x128xf32, #tpu.memory_space<vmem>>, %arg3: memref<8x256xf32, #tpu.memory_space<vmem>>) attributes {dimension_semantics = [#tpu.dimension_semantics<parallel>], iteration_bounds = array<i64: 1>, scalar_prefetch = 0 : i64, scratch_operands = 0 : i64, tpu.core_type = #tpu.core_type<tc>, window_params = [{transform_indices = @transform_0, window_bounds = array<i64: 8, 256>}, {transform_indices = @transform_1, window_bounds = array<i64: 8, 128>}, {transform_indices = @transform_2, window_bounds = array<i64: 8, 256>}]} {
    %c0 = arith.constant 0 : index
    %c0_0 = arith.constant 0 : index
    %0 = vector.load %arg2[%c0, %c0_0] : memref<8x128xf32, #tpu.memory_space<vmem>>, vector<8x128xf32>
    %c0_1 = arith.constant 0 : index
    %c0_2 = arith.constant 0 : index
    %1 = vector.load %arg1[%c0_1, %c0_2] : memref<8x256xf32, #tpu.memory_space<vmem>>, vector<8x128xf32>
    %2 = arith.addf %1, %0 : vector<8x128xf32>
    %c0_3 = arith.constant 0 : index
    %c0_4 = arith.constant 0 : index
    %3 = vector.load %arg3[%c0_3, %c0_4] : memref<8x256xf32, #tpu.memory_space<vmem>>, vector<8x128xf32>
    tpu.vector_store %arg3[%c0_3, %c0_4], %2 {strides = array<i32>} : memref<8x256xf32, #tpu.memory_space<vmem>>, vector<8x128xf32>,
    %c0_5 = arith.constant 0 : index
    %c128 = arith.constant 128 : index
    %4 = vector.load %arg1[%c0_5, %c128] : memref<8x256xf32, #tpu.memory_space<vmem>>, vector<8x128xf32>
    %5 = arith.addf %4, %0 : vector<8x128xf32>
    %c0_6 = arith.constant 0 : index
    %c128_7 = arith.constant 128 : index
    %6 = vector.load %arg3[%c0_6, %c128_7] : memref<8x256xf32, #tpu.memory_space<vmem>>, vector<8x128xf32>
    tpu.vector_store %arg3[%c0_6, %c128_7], %5 {strides = array<i32>} : memref<8x256xf32, #tpu.memory_space<vmem>>, vector<8x128xf32>,
    return
  }
  func.func @transform_0(%arg0: i32) -> (i32, i32) {
    %c0_i32 = arith.constant 0 : i32
    %c0_i32_0 = arith.constant 0 : i32
    return %arg0, %c0_i32 : i32, i32
  }
  func.func @transform_1(%arg0: i32) -> (i32, i32) {
    %c0_i32 = arith.constant 0 : i32
    %c0_i32_0 = arith.constant 0 : i32
    return %arg0, %c0_i32 : i32, i32
  }
  func.func @transform_2(%arg0: i32) -> (i32, i32) {
    %c0_i32 = arith.constant 0 : i32
    %c0_i32_0 = arith.constant 0 : i32
    return %arg0, %c0_i32 : i32, i32
  }
}

</mosaic_0001>

<llo_original>
// kernel: tpu_custom_call.1
$region0: #{tpu_custom_call.1}
  #allocation0 [shape = 'u32[]', space=smem, size = 0x4, offset = 0x4, fixed_abs, tag = 'smem constant byte address 0x4 - core index']
  #allocation1 [shape = 'u32[144,128]{1,0:T(1,128)}', space=vmem, size = 0x12000, scoped, tag = 'internal scratch']
  %s0 = inlined_call_operand.hbm [shape: f32[8,256], index: 0, kind: input, shape index: {}]
  %s1 = inlined_call_operand.hbm [shape: f32[8,128], index: 1, kind: input, shape index: {}]
  %s2 = inlined_call_operand.hbm [shape: f32[8,256], index: 2, kind: output, shape index: {}]
  %s3 = sld [smem:[#allocation0]]
  $region26: #{tpu_custom_call.1} parent=0
    _
  %s5 = ssub.s32 1, %s3
  %s6 = scalar_select 0, %s5, %s3
  $region1: #{tpu_custom_call.1} parent=0
    #allocation2 [shape = 'u8[8192]{0}', space=vmem, size = 0x2000, scoped, tag = 'input window, operand 0, single buffered']
    #allocation3 [shape = 's32[1]{0}', space=sflag, size = 0x4, scoped, tag = 'scoped memory for tpu_custom_call.1']
    #allocation4 [shape = 's32[1]{0}', space=sflag, size = 0x4, scoped, tag = 'scoped memory for tpu_custom_call.1']
    #allocation5 [shape = 'u8[4096]{0}', space=vmem, size = 0x1000, scoped, tag = 'input window, operand 1, single buffered']
    #allocation6 [shape = 's32[1]{0}', space=sflag, size = 0x4, scoped, tag = 'scoped memory for tpu_custom_call.1']
    #allocation7 [shape = 'u8[8192]{0}', space=vmem, size = 0x2000, scoped, tag = 'output window, operand 0, single buffered']
    %7 = vsyncpa [#allocation3], 0
    %8 = vsyncpa [#allocation6], 0
    %9 = vsyncpa [#allocation4], 0
    // Predicated region
    $region2: #{tpu_custom_call.1} parent=1 // pred_check
      _
    $region3: #{tpu_custom_call.1} parent=1 // pred_check_branch
      %11 = sbr.rel (0) target = $region5
    $region4: #{tpu_custom_call.1} parent=1 // pred_region
      %s13 = ssub.s32 256, 256
      %14 = vsyncadd [#allocation3], %s13
      %s16 = sshll.u32 [#allocation2], 4
      %s17 = int_to_ptr.vmem [resolvable:$true] %s16
      %19 = dma.hbm_to_vmem [thread:$0]  %s0, 256, %s17, [#allocation3]
    $region5: #{tpu_custom_call.1} parent=1 // pred_fallthru
      _
    // Predicated region
    $region6: #{tpu_custom_call.1} parent=1 // pred_check
      _
    $region7: #{tpu_custom_call.1} parent=1 // pred_check_branch
      %21 = sbr.rel (0) target = $region9
    $region8: #{tpu_custom_call.1} parent=1 // pred_region
      %s23 = ssub.s32 128, 128
      %24 = vsyncadd [#allocation6], %s23
      %s26 = sshll.u32 [#allocation5], 4
      %s27 = int_to_ptr.vmem [resolvable:$true] %s26
      %29 = dma.hbm_to_vmem [thread:$0]  %s1, 128, %s27, [#allocation6]
    $region9: #{tpu_custom_call.1} parent=1 // pred_fallthru
      _
    // Predicated region
    $region10: #{tpu_custom_call.1} parent=1 // pred_check
      _
    $region11: #{tpu_custom_call.1} parent=1 // pred_check_branch
      %31 = sbr.rel (0) target = $region13
    $region12: #{tpu_custom_call.1} parent=1 // pred_region
      %32 = dma.done [#allocation3], 256
    $region13: #{tpu_custom_call.1} parent=1 // pred_fallthru
      _
    // Predicated region
    $region14: #{tpu_custom_call.1} parent=1 // pred_check
      _
    $region15: #{tpu_custom_call.1} parent=1 // pred_check_branch
      %34 = sbr.rel (0) target = $region17
    $region16: #{tpu_custom_call.1} parent=1 // pred_region
      %35 = dma.done [#allocation6], 128
    $region17: #{tpu_custom_call.1} parent=1 // pred_fallthru
      _
    %v36 = vld [vmem:[#allocation5] sm:$0xff]
    %v37 = vld [vmem:[#allocation2] sm:$0xff]
    %v38 = vadd.f32 %v37, %v36
    %39 = vst [vmem:[#allocation7] sm:$0xff] %v38
    %v40 = vld [vmem:[#allocation2 + $0x8] sm:$0xff]
    %v41 = vadd.f32 %v40, %v36
    %42 = vst [vmem:[#allocation7 + $0x8] sm:$0xff] %v41
    // Predicated region
    $region18: #{tpu_custom_call.1} parent=1 // pred_check
      _
    $region19: #{tpu_custom_call.1} parent=1 // pred_check_branch
      %44 = sbr.rel (0) target = $region21
    $region20: #{tpu_custom_call.1} parent=1 // pred_region
      %s46 = ssub.s32 256, 256
      %47 = vsyncadd [#allocation4], %s46
      %s49 = sshll.u32 [#allocation7], 4
      %s50 = int_to_ptr.vmem [resolvable:$true] %s49
      %52 = dma.vmem_to_hbm [thread:$0]  %s50, 256, %s2, [#allocation4]
    $region21: #{tpu_custom_call.1} parent=1 // pred_fallthru
      _
    // Predicated region
    $region22: #{tpu_custom_call.1} parent=1 // pred_check
      _
    $region23: #{tpu_custom_call.1} parent=1 // pred_check_branch
      %54 = sbr.rel (0) target = $region25
    $region24: #{tpu_custom_call.1} parent=1 // pred_region
      %55 = dma.done [#allocation4], 256
    $region25: #{tpu_custom_call.1} parent=1 // pred_fallthru
      _
    %56 = vsyncpa [#allocation3], 1
    %57 = vsyncpa [#allocation6], 1
    %58 = vsyncpa [#allocation4], 1

</llo_original>
